<compile_context>
chip_gen: v5e
topology: v5e:2x2
jax: 0.10.0
libtpu: 0.0.40
codegen_flags: <defaults>
</compile_context>

<pallas_src>
import math
import functools

import jax
import jax.numpy as jnp
from jax import lax
from jax.experimental import pallas as pl
from jax.experimental.pallas import tpu as pltpu


def _round_up(x, m):
    return (x + m - 1) // m * m


def _attention_kernel(keys_ref, queries_ref, bias_ref, wkv_ref, wq_ref,
                      out_ref, scores_ref, k_scr, v_scr, *, a_pad):
    # Block shapes (per grid step (b, m)):
    #   keys_ref:    (TB, Lp, Dp)  bf16, resident across the m axis
    #   queries_ref: (TB, TM, Dp)  bf16
    #   bias_ref:    (TB, 1, Lp) or (TB, TM, Lp)  f32 additive mask bias
    #   wkv_ref:     (Dp, 2*Ap)   bf16 fused [Wk | Wv] (pre-transposed)
    #   wq_ref:      (Dp, Ap)     bf16, pre-scaled by 1/sqrt(dk)
    #   out_ref:     (TB, TM, Ap)
    #   scores_ref:  (TB, TM, Lp)
    #   k_scr/v_scr: (TB, Lp, Ap) bf16 persistent scratch (carried across m)
    tb = keys_ref.shape[0]

    # ---- Hoisted K/V projection: once per batch block (m == 0) -------------
    @pl.when(pl.program_id(1) == 0)
    def _():
        wkv = wkv_ref[...]

        def proj(i, carry):
            # One wide MXU matmul (N = 2*Ap), split once into k / v scratch.
            kv = jnp.dot(keys_ref[i], wkv, preferred_element_type=jnp.float32)
            k_scr[i] = kv[:, :a_pad].astype(k_scr.dtype)
            v_scr[i] = kv[:, a_pad:].astype(v_scr.dtype)
            return carry

        lax.fori_loop(0, tb, proj, 0)

    # ---- Per-M-tile attention ----------------------------------------------
    wq = wq_ref[...]

    def body(i, carry):
        # Q projection (scale already folded into wq).
        q = jnp.dot(queries_ref[i], wq,
                    preferred_element_type=jnp.float32)               # (TM, Ap) f32

        # q @ k^T, contracting the last axes (no transpose materialized).
        s = lax.dot_general(q.astype(k_scr.dtype), k_scr[i],
                            (((1,), (1,)), ((), ())),
                            preferred_element_type=jnp.float32)       # (TM, Lp)

        # Additive mask bias (padded key columns already carry -1e5).
        s = s + bias_ref[i]

        # Numerically stable softmax over the keys axis.
        mx = jnp.max(s, axis=-1, keepdims=True)
        e = jnp.exp(s - mx)
        denom = jnp.sum(e, axis=-1, keepdims=True)
        probs = e * pl.reciprocal(denom, approx=True)                 # (TM, Lp)

        # Dropout: eval mode -> identity.

        out = jnp.dot(probs.astype(v_scr.dtype), v_scr[i],
                      preferred_element_type=jnp.float32)             # (TM, Ap)

        out_ref[i] = out.astype(out_ref.dtype)
        scores_ref[i] = probs.astype(scores_ref.dtype)
        return carry

    lax.fori_loop(0, tb, body, 0)


def _estimate_vmem_bytes(tb, tm, l_pad, d_pad, a_pad, bias_rows,
                         mxu_bytes, out_bytes):
    dbl = 2  # double-buffered pipeline blocks
    keys_blk = dbl * tb * l_pad * d_pad * mxu_bytes
    q_blk = dbl * tb * tm * d_pad * mxu_bytes
    bias_blk = dbl * tb * bias_rows * l_pad * 4
    w_blk = dbl * d_pad * 3 * a_pad * mxu_bytes
    out_blk = dbl * tb * tm * a_pad * out_bytes
    scores_blk = dbl * tb * tm * l_pad * out_bytes
    kv_scr = 2 * tb * l_pad * a_pad * mxu_bytes  # single-buffered scratch
    return keys_blk + q_blk + bias_blk + w_blk + out_blk + scores_blk + kv_scr


def _vmem_limit_bytes():
    # Generation-aware scoped-VMEM budget: ~96 MiB on 128 MiB parts (v5e/v6e),
    # ~48 MiB on v7x (64 MiB physical VMEM).  Falls back to a safe default.
    try:
        cap = int(getattr(pltpu.get_tpu_info(), "vmem_capacity_bytes",
                          64 * 1024 * 1024))
    except Exception:
        cap = 64 * 1024 * 1024
    return min(cap * 3 // 4, 100 * 1024 * 1024)


def attention_forward(keys, queries, attention_mask, wk_t, wq_t, wv_t, dk,
                      *, tm=None, tb=None, mxu_dtype=jnp.bfloat16,
                      scores_dtype=None):
    """keys: [B, L, D]  queries: [B, M, D] (or None -> keys)
    attention_mask: [B, L] or [B, M, L] (or None)
    wk_t/wq_t/wv_t: [D, A] (transposed nn.Linear weights).
    Returns (out [B, M, A], scores [B, M, L])."""
    if queries is None:
        queries = keys
    B, L, D = keys.shape
    M = queries.shape[1]
    A = wk_t.shape[1]
    dtype = keys.dtype
    if scores_dtype is None:
        scores_dtype = dtype

    # --- lane/sublane-dense padded sizes (128 lanes, 8 sublanes) -------------
    D_pad = _round_up(D, 128)
    A_pad = _round_up(A, 128)
    L_pad = _round_up(L, 128)

    # --- additive mask bias: (1 - mask) * -1e5, kept in f32 ------------------
    if attention_mask is None:
        bias = jnp.zeros((B, 1, L), dtype=jnp.float32)
    else:
        m = attention_mask.astype(jnp.float32)
        if m.ndim == 2:
            m = m[:, None, :]
        bias = (1.0 - m) * -100000.0
    mask_rows = bias.shape[1]

    # --- tile sizing from a VMEM byte budget ----------------------------------
    mxu_bytes = jnp.dtype(mxu_dtype).itemsize
    out_bytes = max(jnp.dtype(dtype).itemsize, jnp.dtype(scores_dtype).itemsize)
    vmem_limit = _vmem_limit_bytes()

    if tb is None:
        # keep >= 2 steps on the parallel batch axis when B >= 2 (megacore).
        tb = min(4, max(1, B // 2))
    if tm is None:
        tm = min(256, _round_up(M, 8))

    def _fits(tb_, tm_):
        bias_rows = 1 if mask_rows == 1 else tm_
        return _estimate_vmem_bytes(tb_, tm_, L_pad, D_pad, A_pad, bias_rows,
                                    mxu_bytes, out_bytes) <= vmem_limit

    while not _fits(tb, tm) and tm > 8:
        tm = max(8, tm // 2)
    while not _fits(tb, tm) and tb > 1:
        tb = max(1, tb // 2)

    B_pad = _round_up(B, tb)
    M_pad = _round_up(M, tm)

    # --- zero-pad activations; cast MXU operands to bf16 ---------------------
    # NOTE: a query row whose *real* keys are all masked normalizes over L_pad
    # instead of L (degenerate case, same spirit as the -1e5 additive mask).
    keys_p = jnp.pad(keys, ((0, B_pad - B), (0, L_pad - L),
                            (0, D_pad - D))).astype(mxu_dtype)
    queries_p = jnp.pad(queries, ((0, B_pad - B), (0, M_pad - M),
                                  (0, D_pad - D))).astype(mxu_dtype)

    mask_rows_pad = 1 if mask_rows == 1 else M_pad
    # Padded key columns MUST carry -1e5 so they cannot leak into the softmax.
    bias_p = jnp.pad(bias, ((0, B_pad - B), (0, mask_rows_pad - mask_rows),
                            (0, L_pad - L)), constant_values=-100000.0)

    # --- pad + fuse weights; fold 1/sqrt(dk) into Wq; cast to bf16 -----------
    wk_p = jnp.pad(wk_t, ((0, D_pad - D), (0, A_pad - A)))
    wv_p = jnp.pad(wv_t, ((0, D_pad - D), (0, A_pad - A)))
    wq_p = jnp.pad(wq_t * (1.0 / math.sqrt(dk)), ((0, D_pad - D), (0, A_pad - A)))
    wkv_p = jnp.concatenate([wk_p, wv_p], axis=1).astype(mxu_dtype)
    wq_p = wq_p.astype(mxu_dtype)

    kernel = functools.partial(_attention_kernel, a_pad=A_pad)

    if mask_rows_pad == 1:
        bias_block = (tb, 1, L_pad)
        bias_idx = lambda b, m: (b, 0, 0)
    else:
        bias_block = (tb, tm, L_pad)
        bias_idx = lambda b, m: (b, m, 0)

    out_p, scores_p = pl.pallas_call(
        kernel,
        grid=(B_pad // tb, M_pad // tm),
        in_specs=[
            pl.BlockSpec((tb, L_pad, D_pad), lambda b, m: (b, 0, 0)),
            pl.BlockSpec((tb, tm, D_pad), lambda b, m: (b, m, 0)),
            pl.BlockSpec(bias_block, bias_idx),
            pl.BlockSpec((D_pad, 2 * A_pad), lambda b, m: (0, 0)),
            pl.BlockSpec((D_pad, A_pad), lambda b, m: (0, 0)),
        ],
        out_specs=[
            pl.BlockSpec((tb, tm, A_pad), lambda b, m: (b, m, 0)),
            pl.BlockSpec((tb, tm, L_pad), lambda b, m: (b, m, 0)),
        ],
        out_shape=[
            jax.ShapeDtypeStruct((B_pad, M_pad, A_pad), dtype),
            jax.ShapeDtypeStruct((B_pad, M_pad, L_pad), scores_dtype),
        ],
        scratch_shapes=[
            pltpu.VMEM((tb, L_pad, A_pad), mxu_dtype),   # k scratch (per b-block)
            pltpu.VMEM((tb, L_pad, A_pad), mxu_dtype),   # v scratch (per b-block)
        ],
        compiler_params=pltpu.CompilerParams(
            # batch axis parallel (megacore); m axis carries the k/v scratch.
            dimension_semantics=("parallel", "arbitrary"),
            vmem_limit_bytes=vmem_limit),
    )(keys_p, queries_p, bias_p, wkv_p, wq_p)

    return out_p[:B, :M, :A], scores_p[:B, :M, :L]


def init_attention_params(key, attention_size, input_size=None):
    """Deterministic xavier_normal init of k/q/v Linear weights ([A, D] in torch,
    stored here pre-transposed as [D, A])."""
    if input_size is None:
        input_size = attention_size
    A, D = attention_size, input_size
    std = math.sqrt(2.0 / (A + D))  # xavier_normal_ gain=1
    k1, k2, k3 = jax.random.split(key, 3)
    wk = jax.random.normal(k1, (A, D), dtype=jnp.float32) * std
    wq = jax.random.normal(k2, (A, D), dtype=jnp.float32) * std
    wv = jax.random.normal(k3, (A, D), dtype=jnp.float32) * std
    # pre-transpose so kernel does x @ W  (equivalent to torch's x @ W.T)
    return wk.T, wq.T, wv.T, D


def _reference(keys, queries, mask, wk_t, wq_t, wv_t, dk):
    k = keys @ wk_t
    q = queries @ wq_t
    v = keys @ wv_t
    scores = jnp.einsum("bmd,bld->bml", q, k) / math.sqrt(dk)
    if mask is not None:
        m = mask[:, None, :] if mask.ndim == 2 else mask
        scores = scores + (1.0 - m) * -100000.0
    probs = jax.nn.softmax(scores, axis=-1)
    return probs @ v, probs


if __name__ == "__main__":
    # Small shapes consistent with the module: B=2, L=M=8, D=A=32
    B, L, D = 2, 8, 32
    attention_size = 32

    root = jax.random.PRNGKey(0)
    k_key, data_key = jax.random.split(root, 2)

    wk_t, wq_t, wv_t, dk = init_attention_params(k_key, attention_size, D)

    keys = jax.random.normal(data_key, (B, L, D), dtype=jnp.float32)
    queries = keys  # module default: queries = keys
    # [B, L] zero-one pad mask: last 2 positions of batch 1 are masked out
    attention_mask = jnp.ones((B, L), dtype=jnp.float32)
    attention_mask = attention_mask.at[1, -2:].set(0.0)

    out, scores = attention_forward(keys, queries, attention_mask,
                                    wk_t, wq_t, wv_t, dk)
    out = jax.block_until_ready(out)
    scores = jax.block_until_ready(scores)

    # sanity check vs. pure-JAX f32 reference. Tolerance accounts for bf16 MXU
    # operands (~2^-9 relative per input) and the approx=True EUP reciprocal
    # in the softmax (~2^-12 relative).
    ref_out, ref_scores = _reference(keys, queries, attention_mask,
                                     wk_t, wq_t, wv_t, dk)
    assert out.shape == (B, L, attention_size)
    assert scores.shape == (B, L, L)
    assert jnp.allclose(out, ref_out, atol=3e-2, rtol=3e-2)
    assert jnp.allclose(scores, ref_scores, atol=3e-2, rtol=3e-2)

    print("KERNEL_OK")
</pallas_src>

<mosaic_0001>
module attributes {stable_mosaic.version = 11 : i64} {
  func.func @_attention_kernel(%arg0: i32, %arg1: i32, %arg2: memref<1x128x128xbf16, #tpu.memory_space<vmem>>, %arg3: memref<1x8x128xbf16, #tpu.memory_space<vmem>>, %arg4: memref<1x1x128xf32, #tpu.memory_space<vmem>>, %arg5: memref<128x256xbf16, #tpu.memory_space<vmem>>, %arg6: memref<128x128xbf16, #tpu.memory_space<vmem>>, %arg7: memref<1x8x128xf32, #tpu.memory_space<vmem>>, %arg8: memref<1x8x128xf32, #tpu.memory_space<vmem>>, %arg9: memref<1x128x128xbf16, #tpu.memory_space<vmem>>, %arg10: memref<1x128x128xbf16, #tpu.memory_space<vmem>>) attributes {dimension_semantics = [#tpu.dimension_semantics<parallel>, #tpu.dimension_semantics<arbitrary>], iteration_bounds = array<i64: 2, 1>, scalar_prefetch = 0 : i64, scratch_operands = 2 : i64, tpu.core_type = #tpu.core_type<tc>, window_params = [{transform_indices = @transform_0, window_bounds = array<i64: 1, 128, 128>}, {transform_indices = @transform_1, window_bounds = array<i64: 1, 8, 128>}, {transform_indices = @transform_2, window_bounds = array<i64: 1, 1, 128>}, {pipeline_mode = #tpu.pipeline_mode<synchronous>, transform_indices = @transform_3, window_bounds = array<i64: 128, 256>}, {pipeline_mode = #tpu.pipeline_mode<synchronous>, transform_indices = @transform_4, window_bounds = array<i64: 128, 128>}, {transform_indices = @transform_5, window_bounds = array<i64: 1, 8, 128>}, {transform_indices = @transform_6, window_bounds = array<i64: 1, 8, 128>}]} {
    %c0_i32 = arith.constant 0 : i32
    %0 = arith.cmpi eq, %arg1, %c0_i32 : i32
    %1 = arith.extui %0 : i1 to i32
    %c0_i32_0 = arith.constant 0 : i32
    %2 = arith.cmpi ne, %1, %c0_i32_0 : i32
    scf.if %2 {
      %c0_19 = arith.constant 0 : index
      %c0_20 = arith.constant 0 : index
      %41 = vector.load %arg5[%c0_19, %c0_20] : memref<128x256xbf16, #tpu.memory_space<vmem>>, vector<128x256xbf16>
      %c0_i32_21 = arith.constant 0 : i32
      %42 = arith.index_cast %c0_i32_21 : i32 to index
      %c0_22 = arith.constant 0 : index
      %c0_23 = arith.constant 0 : index
      %43 = vector.load %arg2[%42, %c0_22, %c0_23] : memref<1x128x128xbf16, #tpu.memory_space<vmem>>, vector<1x128x128xbf16>
      %44 = vector.shape_cast %43 : vector<1x128x128xbf16> to vector<128x128xbf16>
      %cst_24 = arith.constant dense<0.000000e+00> : vector<128x256xf32>
      %45 = tpu.matmul %44, %41, %cst_24 {dimension_numbers = #tpu.dot_dimension_numbers<[1], [0], [0], [1], [0, 0, 1, 1], [], []>} : vector<128x128xbf16>, vector<128x256xbf16>, vector<128x256xf32> -> vector<128x256xf32>
      %46 = vector.extract_strided_slice %45 {offsets = [0, 0], sizes = [128, 128], strides = [1, 1]} : vector<128x256xf32> to vector<128x128xf32>
      %47 = arith.truncf %46 : vector<128x128xf32> to vector<128x128xbf16>
      %48 = arith.index_cast %c0_i32_21 : i32 to index
      %c0_25 = arith.constant 0 : index
      %c0_26 = arith.constant 0 : index
      %49 = vector.load %arg9[%48, %c0_25, %c0_26] : memref<1x128x128xbf16, #tpu.memory_space<vmem>>, vector<1x128x128xbf16>
      %50 = vector.shape_cast %49 : vector<1x128x128xbf16> to vector<128x128xbf16>
      %51 = vector.shape_cast %47 : vector<128x128xbf16> to vector<1x128x128xbf16>
      tpu.vector_store %arg9[%48, %c0_25, %c0_26], %51 {strides = array<i32>} : memref<1x128x128xbf16, #tpu.memory_space<vmem>>, vector<1x128x128xbf16>,
      %52 = vector.extract_strided_slice %45 {offsets = [0, 128], sizes = [128, 128], strides = [1, 1]} : vector<128x256xf32> to vector<128x128xf32>
      %53 = arith.truncf %52 : vector<128x128xf32> to vector<128x128xbf16>
      %54 = arith.index_cast %c0_i32_21 : i32 to index
      %c0_27 = arith.constant 0 : index
      %c0_28 = arith.constant 0 : index
      %55 = vector.load %arg10[%54, %c0_27, %c0_28] : memref<1x128x128xbf16, #tpu.memory_space<vmem>>, vector<1x128x128xbf16>
      %56 = vector.shape_cast %55 : vector<1x128x128xbf16> to vector<128x128xbf16>
      %57 = vector.shape_cast %53 : vector<128x128xbf16> to vector<1x128x128xbf16>
      tpu.vector_store %arg10[%54, %c0_27, %c0_28], %57 {strides = array<i32>} : memref<1x128x128xbf16, #tpu.memory_space<vmem>>, vector<1x128x128xbf16>,
      %c1_i32_29 = arith.constant 1 : i32
    } else {
    }
    %c0 = arith.constant 0 : index
    %c0_1 = arith.constant 0 : index
    %3 = vector.load %arg6[%c0, %c0_1] : memref<128x128xbf16, #tpu.memory_space<vmem>>, vector<128x128xbf16>
    %c0_i32_2 = arith.constant 0 : i32
    %4 = arith.index_cast %c0_i32_2 : i32 to index
    %c0_3 = arith.constant 0 : index
    %c0_4 = arith.constant 0 : index
    %5 = vector.load %arg3[%4, %c0_3, %c0_4] : memref<1x8x128xbf16, #tpu.memory_space<vmem>>, vector<1x8x128xbf16>
    %6 = vector.shape_cast %5 : vector<1x8x128xbf16> to vector<8x128xbf16>
    %cst = arith.constant dense<0.000000e+00> : vector<8x128xf32>
    %7 = tpu.matmul %6, %3, %cst {dimension_numbers = #tpu.dot_dimension_numbers<[1], [0], [0], [1], [0, 0, 1, 1], [], []>} : vector<8x128xbf16>, vector<128x128xbf16>, vector<8x128xf32> -> vector<8x128xf32>
    %8 = arith.truncf %7 : vector<8x128xf32> to vector<8x128xbf16>
    %9 = arith.index_cast %c0_i32_2 : i32 to index
    %c0_5 = arith.constant 0 : index
    %c0_6 = arith.constant 0 : index
    %10 = vector.load %arg9[%9, %c0_5, %c0_6] : memref<1x128x128xbf16, #tpu.memory_space<vmem>>, vector<1x128x128xbf16>
    %11 = vector.shape_cast %10 : vector<1x128x128xbf16> to vector<128x128xbf16>
    %cst_7 = arith.constant dense<0.000000e+00> : vector<8x128xf32>
    %12 = tpu.matmul %8, %11, %cst_7 {dimension_numbers = #tpu.dot_dimension_numbers<[1], [1], [0], [0], [0, 0, 1, 0], [], []>} : vector<8x128xbf16>, vector<128x128xbf16>, vector<8x128xf32> -> vector<8x128xf32>
    %13 = arith.index_cast %c0_i32_2 : i32 to index
    %c0_8 = arith.constant 0 : index
    %c0_9 = arith.constant 0 : index
    %14 = vector.load %arg4[%13, %c0_8, %c0_9] : memref<1x1x128xf32, #tpu.memory_space<vmem>>, vector<1x1x128xf32>
    %15 = vector.shape_cast %14 : vector<1x1x128xf32> to vector<1x128xf32>
    %16 = vector.broadcast %15 : vector<1x128xf32> to vector<8x128xf32>
    %17 = arith.addf %12, %16 : vector<8x128xf32>
    %cst_10 = arith.constant dense<0xFF800000> : vector<8xf32>
    %18 = vector.multi_reduction <maximumf>, %17, %cst_10 [1] : vector<8x128xf32> to vector<8xf32>
    %19 = vector.shape_cast %18 : vector<8xf32> to vector<8x1xf32>
    %20 = vector.broadcast %19 : vector<8x1xf32> to vector<8x128xf32>
    %21 = arith.subf %17, %20 : vector<8x128xf32>
    %22 = math.exp %21 : vector<8x128xf32>
    %cst_11 = arith.constant dense<0.000000e+00> : vector<8xf32>
    %23 = vector.multi_reduction <add>, %22, %cst_11 [1] : vector<8x128xf32> to vector<8xf32>
    %24 = vector.shape_cast %23 : vector<8xf32> to vector<8x1xf32>
    %25 = tpu.reciprocal %24 {approx = true} : vector<8x1xf32> -> vector<8x1xf32>
    %26 = vector.broadcast %25 : vector<8x1xf32> to vector<8x128xf32>
    %27 = arith.mulf %22, %26 : vector<8x128xf32>
    %28 = arith.truncf %27 : vector<8x128xf32> to vector<8x128xbf16>
    %29 = arith.index_cast %c0_i32_2 : i32 to index
    %c0_12 = arith.constant 0 : index
    %c0_13 = arith.constant 0 : index
    %30 = vector.load %arg10[%29, %c0_12, %c0_13] : memref<1x128x128xbf16, #tpu.memory_space<vmem>>, vector<1x128x128xbf16>
    %31 = vector.shape_cast %30 : vector<1x128x128xbf16> to vector<128x128xbf16>
    %cst_14 = arith.constant dense<0.000000e+00> : vector<8x128xf32>
    %32 = tpu.matmul %28, %31, %cst_14 {dimension_numbers = #tpu.dot_dimension_numbers<[1], [0], [0], [1], [0, 0, 1, 1], [], []>} : vector<8x128xbf16>, vector<128x128xbf16>, vector<8x128xf32> -> vector<8x128xf32>
    %33 = arith.index_cast %c0_i32_2 : i32 to index
    %c0_15 = arith.constant 0 : index
    %c0_16 = arith.constant 0 : index
    %34 = vector.load %arg7[%33, %c0_15, %c0_16] : memref<1x8x128xf32, #tpu.memory_space<vmem>>, vector<1x8x128xf32>
    %35 = vector.shape_cast %34 : vector<1x8x128xf32> to vector<8x128xf32>
    %36 = vector.shape_cast %32 : vector<8x128xf32> to vector<1x8x128xf32>
    tpu.vector_store %arg7[%33, %c0_15, %c0_16], %36 {strides = array<i32>} : memref<1x8x128xf32, #tpu.memory_space<vmem>>, vector<1x8x128xf32>,
    %37 = arith.index_cast %c0_i32_2 : i32 to index
    %c0_17 = arith.constant 0 : index
    %c0_18 = arith.constant 0 : index
    %38 = vector.load %arg8[%37, %c0_17, %c0_18] : memref<1x8x128xf32, #tpu.memory_space<vmem>>, vector<1x8x128xf32>
    %39 = vector.shape_cast %38 : vector<1x8x128xf32> to vector<8x128xf32>
    %40 = vector.shape_cast %27 : vector<8x128xf32> to vector<1x8x128xf32>
    tpu.vector_store %arg8[%37, %c0_17, %c0_18], %40 {strides = array<i32>} : memref<1x8x128xf32, #tpu.memory_space<vmem>>, vector<1x8x128xf32>,
    %c1_i32 = arith.constant 1 : i32
    return
  }
  func.func @transform_0(%arg0: i32, %arg1: i32) -> (i32, i32, i32) {
    %c0_i32 = arith.constant 0 : i32
    %c0_i32_0 = arith.constant 0 : i32
    %c0_i32_1 = arith.constant 0 : i32
    return %arg0, %c0_i32, %c0_i32_0 : i32, i32, i32
  }
  func.func @transform_1(%arg0: i32, %arg1: i32) -> (i32, i32, i32) {
    %c0_i32 = arith.constant 0 : i32
    %c0_i32_0 = arith.constant 0 : i32
    return %arg0, %arg1, %c0_i32 : i32, i32, i32
  }
  func.func @transform_2(%arg0: i32, %arg1: i32) -> (i32, i32, i32) {
    %c0_i32 = arith.constant 0 : i32
    %c0_i32_0 = arith.constant 0 : i32
    %c0_i32_1 = arith.constant 0 : i32
    return %arg0, %c0_i32, %c0_i32_0 : i32, i32, i32
  }
  func.func @transform_3(%arg0: i32, %arg1: i32) -> (i32, i32) {
    %c0_i32 = arith.constant 0 : i32
    %c0_i32_0 = arith.constant 0 : i32
    %c0_i32_1 = arith.constant 0 : i32
    return %c0_i32, %c0_i32_0 : i32, i32
  }
  func.func @transform_4(%arg0: i32, %arg1: i32) -> (i32, i32) {
    %c0_i32 = arith.constant 0 : i32
    %c0_i32_0 = arith.constant 0 : i32
    %c0_i32_1 = arith.constant 0 : i32
    return %c0_i32, %c0_i32_0 : i32, i32
  }
  func.func @transform_5(%arg0: i32, %arg1: i32) -> (i32, i32, i32) {
    %c0_i32 = arith.constant 0 : i32
    %c0_i32_0 = arith.constant 0 : i32
    return %arg0, %arg1, %c0_i32 : i32, i32, i32
  }
  func.func @transform_6(%arg0: i32, %arg1: i32) -> (i32, i32, i32) {
    %c0_i32 = arith.constant 0 : i32
    %c0_i32_0 = arith.constant 0 : i32
    return %arg0, %arg1, %c0_i32 : i32, i32, i32
  }
}

</mosaic_0001>

<llo_original>
// kernel: tpu_custom_call.1
$region0: #{tpu_custom_call.1}
  #allocation0 [shape = 'u32[]', space=smem, size = 0x4, offset = 0x4, fixed_abs, tag = 'smem constant byte address 0x4 - core index']
  #allocation1 [shape = 'u32[72,128]{1,0:T(1,128)}', space=vmem, size = 0x9000, scoped, tag = 'internal scratch']
  #allocation2 [shape = 'bf16[1,128,128]{2,1,0:T(8,128)(2,1)}', space=vmem, size = 0x8000, scoped, tag = 'scratch operand']
  #allocation3 [shape = 'bf16[1,128,128]{2,1,0:T(8,128)(2,1)}', space=vmem, size = 0x8000, scoped, tag = 'scratch operand']
  %s0 = inlined_call_operand.hbm [shape: bf16[2,128,128], index: 0, kind: input, shape index: {}]
  %s1 = inlined_call_operand.hbm [shape: bf16[2,8,128], index: 1, kind: input, shape index: {}]
  %s2 = inlined_call_operand.hbm [shape: f32[2,1,128], index: 2, kind: input, shape index: {}]
  %s3 = inlined_call_operand.hbm [shape: bf16[128,256], index: 3, kind: input, shape index: {}]
  %s4 = inlined_call_operand.hbm [shape: bf16[128,128], index: 4, kind: input, shape index: {}]
  %s5 = inlined_call_operand.hbm [shape: f32[2,8,128], index: 5, kind: output, shape index: {0}]
  %s6 = inlined_call_operand.hbm [shape: f32[2,8,128], index: 6, kind: output, shape index: {1}]
  %7 = xla_tuple %s5, %s6
  %s8 = sld [smem:[#allocation0]]
  $region85: #{tpu_custom_call.1} parent=0
    _
  %s10 = ssub.s32 1, %s8
  %s11 = scalar_select 0, %s10, %s8
  $region1: #{tpu_custom_call.1} parent=0
    #allocation4 [shape = 'u8[65536]{0}', space=vmem, size = 0x10000, scoped, tag = 'input window, operand 0']
    #allocation5 [shape = 's32[2]{0}', space=sflag, size = 0x8, scoped, tag = 'scoped memory for tpu_custom_call.1']
    #allocation6 [shape = 's32[2]{0}', space=sflag, size = 0x8, scoped, tag = 'scoped memory for tpu_custom_call.1']
    #allocation7 [shape = 'u8[4096]{0}', space=vmem, size = 0x1000, scoped, tag = 'input window, operand 1']
    #allocation8 [shape = 's32[2]{0}', space=sflag, size = 0x8, scoped, tag = 'scoped memory for tpu_custom_call.1']
    #allocation9 [shape = 'u8[1024]{0}', space=vmem, size = 0x400, scoped, tag = 'input window, operand 2']
    #allocation10 [shape = 'u8[65536]{0}', space=vmem, size = 0x10000, scoped, tag = 'input window, operand 3, single buffered']
    #allocation11 [shape = 's32[1]{0}', space=sflag, size = 0x4, scoped, tag = 'scoped memory for tpu_custom_call.1']
    #allocation12 [shape = 'u8[32768]{0}', space=vmem, size = 0x8000, scoped, tag = 'input window, operand 4, single buffered']
    #allocation13 [shape = 'u8[8192]{0}', space=vmem, size = 0x2000, scoped, tag = 'output window, operand 0']
    #allocation14 [shape = 'u8[8192]{0}', space=vmem, size = 0x2000, scoped, tag = 'output window, operand 1']
    #allocation15 [shape = 's32[2]{0}', space=sflag, size = 0x8, scoped, tag = 'scoped memory for tpu_custom_call.1']
    %12 = vsyncpa [#allocation5], 0
    %s13 = scalar_lea.sflag [#allocation5], 1
    %14 = vsyncpa %s13, 0
    %15 = vsyncpa [#allocation8], 0
    %s16 = scalar_lea.sflag [#allocation8], 1
    %17 = vsyncpa %s16, 0
    %18 = vsyncpa [#allocation11], 0
    %19 = vsyncpa [#allocation6], 0
    %s20 = scalar_lea.sflag [#allocation6], 1
    %21 = vsyncpa %s20, 0
    %22 = vsyncpa [#allocation15], 0
    %s23 = scalar_lea.sflag [#allocation15], 1
    %24 = vsyncpa %s23, 0
    loop: start=0, step=1, limit=4
    $region2: #{tpu_custom_call.1} parent=1 // loop_pre_header
      _
    $region3: #{tpu_custom_call.1} parent=1 // loop_header
      %s26 = sphi 0, %s30
      %p27 = scmp.ge.s32.totalorder %s26, 4
      %s33 = sphi 0, %s45
      %s34 = sphi 0, %s41
      %s35 = sphi 0, %s33
      %s36 = sphi 0, %s34
      %s37 = sphi 0, %s35
      %s38 = sphi 0, %s36
      %s48 = sphi 0, %s50
      %s51 = sphi 0, %s48
      %s52 = sphi 0, %s51
      %s68 = sphi 0, %s52
      %s76 = sphi 0, %s78
      %s79 = sphi 0, %s76
      %s80 = sphi 0, %s79
      %s96 = sphi 0, %s80
      %s102 = sphi 0, %s104
      %s105 = sphi 0, %s102
      %s106 = sphi 0, %s105
      %s122 = sphi 0, %s106
      %s126 = sphi 0, %s126
      %s128 = sphi 0, %s126
      %s129 = sphi 0, %s128
      %s143 = sphi 0, %s129
      %s147 = sphi 0, %s147
      %s149 = sphi 0, %s147
      %s150 = sphi 0, %s149
      %s164 = sphi 0, %s150
      %s172 = sphi 0, %s174
      %s175 = sphi 0, %s172
      %s176 = sphi 0, %s175
      %s192 = sphi 0, %s176
      %s200 = sphi 0, %s202
      %s203 = sphi 0, %s200
      %s204 = sphi 0, %s203
      %s220 = sphi 0, %s204
    $region4: #{tpu_custom_call.1} parent=1 // loop_header_branch
      %29 = sbr.rel (%p27) target = $region8
    $region5: #{tpu_custom_call.1} parent=1 // loop_body
      %s31 = ssub.s32 %s26, 1
      %s32 = ssub.s32 %s26, 2
      %s39 = sadd.s32 1, %s34
      %p40 = scmp.ge.s32.totalorder %s39, 1
      %s41 = scalar_select %p40, 0, %s39
      %s42 = sadd.s32 1, %s33
      %s43 = scalar_select %p40, %s42, %s33
      %p44 = scmp.ge.s32.totalorder %s43, 2
      %s45 = scalar_select %p44, 0, %s43
      %s46 = ssub.s32 %s33, %s45
      %p47 = scmp.eq.s32.totalorder %s46, 0
      %s49 = sadd.s32 %s48, 1
      %s50 = scalar_select %p47, %s48, %s49
      %p53 = pneg %p47
      %p54 = scmp.eq.s32.totalorder %s26, 1
      %p55 = por %p53, %p54
      %p56 = scmp.ne.s32.totalorder %s48, %s51
      %p57 = scmp.eq.s32.totalorder %s26, 0
      %p58 = por %p56, %p57
      %p59 = scmp.ne.s32.totalorder %s48, %s51
      %p60 = scmp.eq.s32.totalorder %s31, 1
      %p61 = por %p59, %p60
      %p62 = scmp.ne.s32.totalorder %s51, %s52
      %p63 = scmp.eq.s32.totalorder %s31, 0
      %p64 = por %p62, %p63
      %p65 = scmp.ne.s32.totalorder %s51, %s52
      %p66 = scmp.eq.s32.totalorder %s32, 1
      %p67 = por %p65, %p66
      %p69 = scmp.ne.s32.totalorder %s52, %s68
      %p70 = scmp.eq.s32.totalorder %s32, 0
      %p71 = por %p69, %p70
      %s72 = ssub.s32 %s33, %s45
      %s73 = ssub.s32 %s34, %s41
      %s74 = sor.u32 %s72, %s73
      %p75 = scmp.eq.s32.totalorder %s74, 0
      %s77 = sadd.s32 %s76, 1
      %s78 = scalar_select %p75, %s76, %s77
      %p81 = pneg %p75
      %p82 = scmp.eq.s32.totalorder %s26, 1
      %p83 = por %p81, %p82
      %p84 = scmp.ne.s32.totalorder %s76, %s79
      %p85 = scmp.eq.s32.totalorder %s26, 0
      %p86 = por %p84, %p85
      %p87 = scmp.ne.s32.totalorder %s76, %s79
      %p88 = scmp.eq.s32.totalorder %s31, 1
      %p89 = por %p87, %p88
      %p90 = scmp.ne.s32.totalorder %s79, %s80
      %p91 = scmp.eq.s32.totalorder %s31, 0
      %p92 = por %p90, %p91
      %p93 = scmp.ne.s32.totalorder %s79, %s80
      %p94 = scmp.eq.s32.totalorder %s32, 1
      %p95 = por %p93, %p94
      %p97 = scmp.ne.s32.totalorder %s80, %s96
      %p98 = scmp.eq.s32.totalorder %s32, 0
      %p99 = por %p97, %p98
      %s100 = ssub.s32 %s33, %s45
      %p101 = scmp.eq.s32.totalorder %s100, 0
      %s103 = sadd.s32 %s102, 1
      %s104 = scalar_select %p101, %s102, %s103
      %p107 = pneg %p101
      %p108 = scmp.eq.s32.totalorder %s26, 1
      %p109 = por %p107, %p108
      %p110 = scmp.ne.s32.totalorder %s102, %s105
      %p111 = scmp.eq.s32.totalorder %s26, 0
      %p112 = por %p110, %p111
      %p113 = scmp.ne.s32.totalorder %s102, %s105
      %p114 = scmp.eq.s32.totalorder %s31, 1
      %p115 = por %p113, %p114
      %p116 = scmp.ne.s32.totalorder %s105, %s106
      %p117 = scmp.eq.s32.totalorder %s31, 0
      %p118 = por %p116, %p117
      %p119 = scmp.ne.s32.totalorder %s105, %s106
      %p120 = scmp.eq.s32.totalorder %s32, 1
      %p121 = por %p119, %p120
      %p123 = scmp.ne.s32.totalorder %s106, %s122
      %p124 = scmp.eq.s32.totalorder %s32, 0
      %p125 = por %p123, %p124
      %s127 = sadd.s32 %s126, 1
      %p130 = scmp.eq.s32.totalorder %s26, 1
      %p131 = scmp.ne.s32.totalorder %s126, %s128
      %p132 = scmp.eq.s32.totalorder %s26, 0
      %p133 = por %p131, %p132
      %p134 = scmp.ne.s32.totalorder %s126, %s128
      %p135 = scmp.eq.s32.totalorder %s31, 1
      %p136 = por %p134, %p135
      %p137 = scmp.ne.s32.totalorder %s128, %s129
      %p138 = scmp.eq.s32.totalorder %s31, 0
      %p139 = por %p137, %p138
      %p140 = scmp.ne.s32.totalorder %s128, %s129
      %p141 = scmp.eq.s32.totalorder %s32, 1
      %p142 = por %p140, %p141
      %p144 = scmp.ne.s32.totalorder %s129, %s143
      %p145 = scmp.eq.s32.totalorder %s32, 0
      %p146 = por %p144, %p145
      %s148 = sadd.s32 %s147, 1
      %p151 = scmp.eq.s32.totalorder %s26, 1
      %p152 = scmp.ne.s32.totalorder %s147, %s149
      %p153 = scmp.eq.s32.totalorder %s26, 0
      %p154 = por %p152, %p153
      %p155 = scmp.ne.s32.totalorder %s147, %s149
      %p156 = scmp.eq.s32.totalorder %s31, 1
      %p157 = por %p155, %p156
      %p158 = scmp.ne.s32.totalorder %s149, %s150
      %p159 = scmp.eq.s32.totalorder %s31, 0
      %p160 = por %p158, %p159
      %p161 = scmp.ne.s32.totalorder %s149, %s150
      %p162 = scmp.eq.s32.totalorder %s32, 1
      %p163 = por %p161, %p162
      %p165 = scmp.ne.s32.totalorder %s150, %s164
      %p166 = scmp.eq.s32.totalorder %s32, 0
      %p167 = por %p165, %p166
      %s168 = ssub.s32 %s33, %s45
      %s169 = ssub.s32 %s34, %s41
      %s170 = sor.u32 %s168, %s169
      %p171 = scmp.eq.s32.totalorder %s170, 0
      %s173 = sadd.s32 %s172, 1
      %s174 = scalar_select %p171, %s172, %s173
      %p177 = pneg %p171
      %p178 = scmp.eq.s32.totalorder %s26, 1
      %p179 = por %p177, %p178
      %p180 = scmp.ne.s32.totalorder %s172, %s175
      %p181 = scmp.eq.s32.totalorder %s26, 0
      %p182 = por %p180, %p181
      %p183 = scmp.ne.s32.totalorder %s172, %s175
      %p184 = scmp.eq.s32.totalorder %s31, 1
      %p185 = por %p183, %p184
      %p186 = scmp.ne.s32.totalorder %s175, %s176
      %p187 = scmp.eq.s32.totalorder %s31, 0
      %p188 = por %p186, %p187
      %p189 = scmp.ne.s32.totalorder %s175, %s176
      %p190 = scmp.eq.s32.totalorder %s32, 1
      %p191 = por %p189, %p190
      %p193 = scmp.ne.s32.totalorder %s176, %s192
      %p194 = scmp.eq.s32.totalorder %s32, 0
      %p195 = por %p193, %p194
      %s196 = ssub.s32 %s33, %s45
      %s197 = ssub.s32 %s34, %s41
      %s198 = sor.u32 %s196, %s197
      %p199 = scmp.eq.s32.totalorder %s198, 0
      %s201 = sadd.s32 %s200, 1
      %s202 = scalar_select %p199, %s200, %s201
      %p205 = pneg %p199
      %p206 = scmp.eq.s32.totalorder %s26, 1
      %p207 = por %p205, %p206
      %p208 = scmp.ne.s32.totalorder %s200, %s203
      %p209 = scmp.eq.s32.totalorder %s26, 0
      %p210 = por %p208, %p209
      %p211 = scmp.ne.s32.totalorder %s200, %s203
      %p212 = scmp.eq.s32.totalorder %s31, 1
      %p213 = por %p211, %p212
      %p214 = scmp.ne.s32.totalorder %s203, %s204
      %p215 = scmp.eq.s32.totalorder %s31, 0
      %p216 = por %p214, %p215
      %p217 = scmp.ne.s32.totalorder %s203, %s204
      %p218 = scmp.eq.s32.totalorder %s32, 1
      %p219 = por %p217, %p218
      %p221 = scmp.ne.s32.totalorder %s204, %s220
      %p222 = scmp.eq.s32.totalorder %s32, 0
      %p223 = por %p221, %p222
      %p224 = scmp.le.s32.totalorder 1, %s26
      %p225 = scmp.lt.s32.totalorder %s26, 3
      %p226 = pnand %p224, %p225
      %p227 = pneg %p226
      // Predicated region
      $region9: #{tpu_custom_call.1} parent=5 // pred_check
        _
      $region10: #{tpu_custom_call.1} parent=5 // pred_check_branch
        %229 = sbr.rel (%p226) target = $region12
      $region11: #{tpu_custom_call.1} parent=5 // pred_region
        %s230 = ssub.s32 %s26, 1
        // Predicated region
        $region13: #{tpu_custom_call.1} parent=11 // pred_check
          %p231 = pneg %p139
        $region14: #{tpu_custom_call.1} parent=11 // pred_check_branch
          %233 = sbr.rel (%p231) target = $region16
        $region15: #{tpu_custom_call.1} parent=11 // pred_region
          %235 = vsyncadd [#allocation11], 0
          %s236 = sshll.u32 %s3, 4
          %s237 = int_to_ptr.hbm [resolvable:$true] %s236
          %s238 = sshll.u32 [#allocation10], 4
          %s239 = int_to_ptr.vmem [resolvable:$true] %s238
          %244 = dma.hbm_to_vmem [thread:$0]  %s237, 2048, %s239, [#allocation11], 128, 128, 8
        $region16: #{tpu_custom_call.1} parent=11 // pred_fallthru
          _
        // Predicated region
        $region17: #{tpu_custom_call.1} parent=11 // pred_check
          %p245 = pneg %p160
        $region18: #{tpu_custom_call.1} parent=11 // pred_check_branch
          %247 = sbr.rel (%p245) target = $region20
        $region19: #{tpu_custom_call.1} parent=11 // pred_region
          %249 = vsyncadd [#allocation11], 0
          %s250 = sshll.u32 %s4, 4
          %s251 = int_to_ptr.hbm [resolvable:$true] %s250
          %s252 = sshll.u32 [#allocation12], 4
          %s253 = int_to_ptr.vmem [resolvable:$true] %s252
          %258 = dma.hbm_to_vmem [thread:$0]  %s251, 1024, %s253, [#allocation11], 64, 64, 4
        $region20: #{tpu_custom_call.1} parent=11 // pred_fallthru
          _
      $region12: #{tpu_custom_call.1} parent=5 // pred_fallthru
        _
      %p259 = scmp.lt.s32.totalorder %s26, 2
      // Predicated region
      $region21: #{tpu_custom_call.1} parent=5 // pred_check
        %p260 = pneg %p259
      $region22: #{tpu_custom_call.1} parent=5 // pred_check_branch
        %262 = sbr.rel (%p260) target = $region24
      $region23: #{tpu_custom_call.1} parent=5 // pred_region
        // Predicated region
        $region25: #{tpu_custom_call.1} parent=23 // pred_check
          %p263 = pneg %p58
        $region26: #{tpu_custom_call.1} parent=23 // pred_check_branch
          %265 = sbr.rel (%p263) target = $region28
        $region27: #{tpu_custom_call.1} parent=23 // pred_region
          %s266 = sand.u32 %s48, 1
          %s267 = scalar_lea.sflag [#allocation5], %s266
          %s268 = sand.u32 %s48, 1
          %s269 = smul.addr %s268, 64
          %s270 = scalar_lea.vmem [#allocation4], %s269
          %272 = vsyncadd %s267, 0
          %s273 = smul.addr %s33, 16
          %s274 = smul.addr %s273, 4
          %s275 = scalar_lea.hbm %s0, %s274
          %s276 = sshll.u32 %s275, 4
          %s277 = int_to_ptr.hbm [resolvable:$true] %s276
          %s278 = sshll.u32 %s270, 4
          %s279 = int_to_ptr.vmem [resolvable:$true] %s278
          %284 = dma.hbm_to_vmem [thread:$0]  %s277, 1024, %s279, %s267, 64, 64, 4
        $region28: #{tpu_custom_call.1} parent=23 // pred_fallthru
          _
        // Predicated region
        $region29: #{tpu_custom_call.1} parent=23 // pred_check
          %p285 = pneg %p86
        $region30: #{tpu_custom_call.1} parent=23 // pred_check_branch
          %287 = sbr.rel (%p285) target = $region32
        $region31: #{tpu_custom_call.1} parent=23 // pred_region
          %s288 = sand.u32 %s26, 1
          %s289 = scalar_lea.sflag [#allocation8], %s288
          %s290 = sand.u32 %s76, 1
          %s291 = smul.addr %s290, 4
          %s292 = scalar_lea.vmem [#allocation7], %s291
          %294 = vsyncadd %s289, 0
          %s295 = sadd.s32 %s34, %s33
          %s296 = smul.addr %s295, 4
          %s297 = scalar_lea.hbm %s1, %s296
          %s299 = sshll.u32 %s297, 4
          %s300 = int_to_ptr.hbm [resolvable:$true] %s299
          %s301 = sshll.u32 %s292, 4
          %s302 = int_to_ptr.vmem [resolvable:$true] %s301
          %304 = dma.hbm_to_vmem [thread:$0]  %s300, 64, %s302, %s289
        $region32: #{tpu_custom_call.1} parent=23 // pred_fallthru
          _
        // Predicated region
        $region33: #{tpu_custom_call.1} parent=23 // pred_check
          %p305 = pneg %p112
        $region34: #{tpu_custom_call.1} parent=23 // pred_check_branch
          %307 = sbr.rel (%p305) target = $region36
        $region35: #{tpu_custom_call.1} parent=23 // pred_region
          %s308 = sand.u32 %s26, 1
          %s309 = scalar_lea.sflag [#allocation8], %s308
          %s310 = sand.u32 %s102, 1
          %s311 = scalar_lea.vmem [#allocation9], %s310
          %313 = vsyncadd %s309, 0
          %s314 = scalar_lea.hbm %s2, %s33
          %s316 = sshll.u32 %s314, 4
          %s317 = int_to_ptr.hbm [resolvable:$true] %s316
          %s318 = sshll.u32 %s311, 4
          %s319 = int_to_ptr.vmem [resolvable:$true] %s318
          %321 = dma.hbm_to_vmem [thread:$0]  %s317, 16, %s319, %s309
        $region36: #{tpu_custom_call.1} parent=23 // pred_fallthru
          _
      $region24: #{tpu_custom_call.1} parent=5 // pred_fallthru
        _
      %p322 = scmp.le.s32.totalorder 1, %s26
      %p323 = scmp.lt.s32.totalorder %s26, 3
      %p324 = pnand %p322, %p323
      %p325 = pneg %p324
      // Predicated region
      $region37: #{tpu_custom_call.1} parent=5 // pred_check
        _
      $region38: #{tpu_custom_call.1} parent=5 // pred_check_branch
        %327 = sbr.rel (%p324) target = $region40
      $region39: #{tpu_custom_call.1} parent=5 // pred_region
        %s328 = ssub.s32 %s26, 1
        %s329 = sand.u32 %s51, 1
        %s330 = scalar_lea.sflag [#allocation5], %s329
        %s331 = sand.u32 %s51, 1
        %s332 = smul.addr %s331, 64
        %s333 = scalar_lea.vmem [#allocation4], %s332
        // Predicated region
        $region41: #{tpu_custom_call.1} parent=39 // pred_check
          %p334 = pneg %p64
        $region42: #{tpu_custom_call.1} parent=39 // pred_check_branch
          %336 = sbr.rel (%p334) target = $region44
        $region43: #{tpu_custom_call.1} parent=39 // pred_region
          %338 = dma.done %s330, 1024
        $region44: #{tpu_custom_call.1} parent=39 // pred_fallthru
          _
        %s339 = sand.u32 %s31, 1
        %s340 = scalar_lea.sflag [#allocation8], %s339
        %s341 = sand.u32 %s79, 1
        %s342 = smul.addr %s341, 4
        %s343 = scalar_lea.vmem [#allocation7], %s342
        // Predicated region
        $region45: #{tpu_custom_call.1} parent=39 // pred_check
          %p344 = pneg %p92
        $region46: #{tpu_custom_call.1} parent=39 // pred_check_branch
          %346 = sbr.rel (%p344) target = $region48
        $region47: #{tpu_custom_call.1} parent=39 // pred_region
          %348 = dma.done %s340, 64
        $region48: #{tpu_custom_call.1} parent=39 // pred_fallthru
          _
        %s349 = sand.u32 %s31, 1
        %s350 = scalar_lea.sflag [#allocation8], %s349
        %s351 = sand.u32 %s105, 1
        %s352 = scalar_lea.vmem [#allocation9], %s351
        // Predicated region
        $region49: #{tpu_custom_call.1} parent=39 // pred_check
          %p353 = pneg %p118
        $region50: #{tpu_custom_call.1} parent=39 // pred_check_branch
          %355 = sbr.rel (%p353) target = $region52
        $region51: #{tpu_custom_call.1} parent=39 // pred_region
          %357 = dma.done %s350, 16
        $region52: #{tpu_custom_call.1} parent=39 // pred_fallthru
          _
        // Predicated region
        $region53: #{tpu_custom_call.1} parent=39 // pred_check
          %p358 = pneg %p139
        $region54: #{tpu_custom_call.1} parent=39 // pred_check_branch
          %360 = sbr.rel (%p358) target = $region56
        $region55: #{tpu_custom_call.1} parent=39 // pred_region
          %362 = dma.done [#allocation11], 2048
        $region56: #{tpu_custom_call.1} parent=39 // pred_fallthru
          _
        // Predicated region
        $region57: #{tpu_custom_call.1} parent=39 // pred_check
          %p363 = pneg %p160
        $region58: #{tpu_custom_call.1} parent=39 // pred_check_branch
          %365 = sbr.rel (%p363) target = $region60
        $region59: #{tpu_custom_call.1} parent=39 // pred_region
          %367 = dma.done [#allocation11], 1024
        $region60: #{tpu_custom_call.1} parent=39 // pred_fallthru
          _
        %s368 = sand.u32 %s51, 1
        %s369 = scalar_lea.sflag [#allocation5], %s368
        %s370 = sand.u32 %s51, 1
        %s371 = smul.addr %s370, 64
        %s372 = scalar_lea.vmem [#allocation4], %s371
        %p373 = pneg %p64
        %p374 = pneg %p61
        %s375 = sand.u32 %s31, 1
        %s376 = scalar_lea.sflag [#allocation8], %s375
        %s377 = sand.u32 %s79, 1
        %s378 = smul.addr %s377, 4
        %s379 = scalar_lea.vmem [#allocation7], %s378
        %p380 = pneg %p92
        %p381 = pneg %p89
        %s382 = sand.u32 %s31, 1
        %s383 = scalar_lea.sflag [#allocation8], %s382
        %s384 = sand.u32 %s105, 1
        %s385 = scalar_lea.vmem [#allocation9], %s384
        %p386 = pneg %p118
        %p387 = pneg %p115
        %p388 = pneg %p139
        %p389 = pneg %p136
        %p390 = pneg %p160
        %p391 = pneg %p157
        %p392 = pneg %p188
        %p393 = pneg %p185
        %s394 = sand.u32 %s175, 1
        %s395 = scalar_lea.sflag [#allocation6], %s394
        %s396 = sand.u32 %s175, 1
        %s397 = smul.addr %s396, 8
        %s398 = scalar_lea.vmem [#allocation13], %s397
        %p399 = pneg %p216
        %p400 = pneg %p213
        %s401 = sand.u32 %s203, 1
        %s402 = scalar_lea.sflag [#allocation15], %s401
        %s403 = sand.u32 %s203, 1
        %s404 = smul.addr %s403, 8
        %s405 = scalar_lea.vmem [#allocation14], %s404
        %p406 = scmp.eq.s32.totalorder %s36, 0
        // Predicated region
        $region61: #{tpu_custom_call.1} parent=39 // pred_check
          %p407 = pneg %p406
        $region62: #{tpu_custom_call.1} parent=39 // pred_check_branch
          %409 = sbr.rel (%p407) target = $region64
        $region63: #{tpu_custom_call.1} parent=39 // pred_region
          %v410 = vld [vmem:[#allocation10] sm:$0xff]
          %v411 = vld [vmem:[#allocation10 + $0x8] sm:$0xff]
          %v412 = vld [vmem:[#allocation10 + $0x10] sm:$0xff]
          %v413 = vld [vmem:[#allocation10 + $0x18] sm:$0xff]
          %v414 = vld [vmem:[#allocation10 + $0x20] sm:$0xff]
          %v415 = vld [vmem:[#allocation10 + $0x28] sm:$0xff]
          %v416 = vld [vmem:[#allocation10 + $0x30] sm:$0xff]
          %v417 = vld [vmem:[#allocation10 + $0x38] sm:$0xff]
          %v418 = vld [vmem:[#allocation10 + $0x40] sm:$0xff]
          %v419 = vld [vmem:[#allocation10 + $0x48] sm:$0xff]
          %v420 = vld [vmem:[#allocation10 + $0x50] sm:$0xff]
          %v421 = vld [vmem:[#allocation10 + $0x58] sm:$0xff]
          %v422 = vld [vmem:[#allocation10 + $0x60] sm:$0xff]
          %v423 = vld [vmem:[#allocation10 + $0x68] sm:$0xff]
          %v424 = vld [vmem:[#allocation10 + $0x70] sm:$0xff]
          %v425 = vld [vmem:[#allocation10 + $0x78] sm:$0xff]
          %v426 = vld [vmem:[%s333] sm:$0xf]
          %v427 = vld [vmem:[%s333 + $0x4] sm:$0xf]
          %v428 = vld [vmem:[%s333 + $0x8] sm:$0xf]
          %v429 = vld [vmem:[%s333 + $0xc] sm:$0xf]
          %v430 = vld [vmem:[%s333 + $0x10] sm:$0xf]
          %v431 = vld [vmem:[%s333 + $0x14] sm:$0xf]
          %v432 = vld [vmem:[%s333 + $0x18] sm:$0xf]
          %v433 = vld [vmem:[%s333 + $0x1c] sm:$0xf]
          %v434 = vld [vmem:[%s333 + $0x20] sm:$0xf]
          %v435 = vld [vmem:[%s333 + $0x24] sm:$0xf]
          %v436 = vld [vmem:[%s333 + $0x28] sm:$0xf]
          %v437 = vld [vmem:[%s333 + $0x2c] sm:$0xf]
          %v438 = vld [vmem:[%s333 + $0x30] sm:$0xf]
          %v439 = vld [vmem:[%s333 + $0x34] sm:$0xf]
          %v440 = vld [vmem:[%s333 + $0x38] sm:$0xf]
          %v441 = vld [vmem:[%s333 + $0x3c] sm:$0xf]
          %v458 = vunpack.c.l.b16 %v426
          %v459 = vunpack.c.l.b16 %v427
          %v460 = vunpack.c.l.b16 %v428
          %v461 = vunpack.c.l.b16 %v429
          %v462 = vunpack.c.l.b16 %v430
          %v463 = vunpack.c.l.b16 %v431
          %v464 = vunpack.c.l.b16 %v432
          %v465 = vunpack.c.l.b16 %v433
          %v466 = vunpack.c.l.b16 %v434
          %v467 = vunpack.c.l.b16 %v435
          %v468 = vunpack.c.l.b16 %v436
          %v469 = vunpack.c.l.b16 %v437
          %v470 = vunpack.c.l.b16 %v438
          %v471 = vunpack.c.l.b16 %v439
          %v472 = vunpack.c.l.b16 %v440
          %v473 = vunpack.c.l.b16 %v441
          %v474 = vpack.c.b16 %v459, %v458
          %v475 = vpack.c.b16 %v461, %v460
          %v476 = vpack.c.b16 %v463, %v462
          %v477 = vpack.c.b16 %v465, %v464
          %v478 = vpack.c.b16 %v467, %v466
          %v479 = vpack.c.b16 %v469, %v468
          %v480 = vpack.c.b16 %v471, %v470
          %v481 = vpack.c.b16 %v473, %v472
          %v506 = vunpack.c.l.b16 %v410
          %v507 = vunpack.c.h.b16 %v410
          %v508 = vunpack.c.l.b16 %v411
          %v509 = vunpack.c.h.b16 %v411
          %v510 = vunpack.c.l.b16 %v412
          %v511 = vunpack.c.h.b16 %v412
          %v512 = vunpack.c.l.b16 %v413
          %v513 = vunpack.c.h.b16 %v413
          %v514 = vunpack.c.l.b16 %v414
          %v515 = vunpack.c.h.b16 %v414
          %v516 = vunpack.c.l.b16 %v415
          %v517 = vunpack.c.h.b16 %v415
          %v518 = vunpack.c.l.b16 %v416
          %v519 = vunpack.c.h.b16 %v416
          %v520 = vunpack.c.l.b16 %v417
          %v521 = vunpack.c.h.b16 %v417
          %v522 = vunpack.c.l.b16 %v418
          %v523 = vunpack.c.h.b16 %v418
          %v524 = vunpack.c.l.b16 %v419
          %v525 = vunpack.c.h.b16 %v419
          %v526 = vunpack.c.l.b16 %v420
          %v527 = vunpack.c.h.b16 %v420
          %v528 = vunpack.c.l.b16 %v421
          %v529 = vunpack.c.h.b16 %v421
          %v530 = vunpack.c.l.b16 %v422
          %v531 = vunpack.c.h.b16 %v422
          %v532 = vunpack.c.l.b16 %v423
          %v533 = vunpack.c.h.b16 %v423
          %v534 = vunpack.c.l.b16 %v424
          %v535 = vunpack.c.h.b16 %v424
          %v536 = vunpack.c.l.b16 %v425
          %v537 = vunpack.c.h.b16 %v425
          %v538 = vpack.c.b16 %v508, %v506
          %v539 = vpack.c.b16 %v509, %v507
          %v540 = vpack.c.b16 %v512, %v510
          %v541 = vpack.c.b16 %v513, %v511
          %v542 = vpack.c.b16 %v516, %v514
          %v543 = vpack.c.b16 %v517, %v515
          %v544 = vpack.c.b16 %v520, %v518
          %v545 = vpack.c.b16 %v521, %v519
          %v546 = vpack.c.b16 %v524, %v522
          %v547 = vpack.c.b16 %v525, %v523
          %v548 = vpack.c.b16 %v528, %v526
          %v549 = vpack.c.b16 %v529, %v527
          %v550 = vpack.c.b16 %v532, %v530
          %v551 = vpack.c.b16 %v533, %v531
          %v552 = vpack.c.b16 %v536, %v534
          %v553 = vpack.c.b16 %v537, %v535
          %570 = vmatpush.bf16.msra.mxu0 %v552
          %571 = vmatpush.bf16.msra.mxu0 %v550
          %572 = vmatpush.bf16.msra.mxu0 %v548
          %573 = vmatpush.bf16.msra.mxu0 %v546
          %574 = vmatpush.bf16.msra.mxu0 %v544
          %575 = vmatpush.bf16.msra.mxu0 %v542
          %576 = vmatpush.bf16.msra.mxu0 %v540
          %577 = vmatpush.bf16.msra.mxu0 %v538
          %578 = vmatmul.bf16.gmra.mxu0 %v474
          %v579 = vpop.f32.mrf.mxu0
          %v580 = vadd.f32 0.0, %v579
          %v581 = vpop.f32.mrf.mxu0
          %v582 = vadd.f32 0.0, %v581
          %583 = vmatmul.bf16.gmra.mxu0 %v475
          %v584 = vpop.f32.mrf.mxu0
          %v585 = vadd.f32 0.0, %v584
          %v586 = vpop.f32.mrf.mxu0
          %v587 = vadd.f32 0.0, %v586
          %588 = vmatmul.bf16.gmra.mxu0 %v476
          %v589 = vpop.f32.mrf.mxu0
          %v590 = vadd.f32 0.0, %v589
          %v591 = vpop.f32.mrf.mxu0
          %v592 = vadd.f32 0.0, %v591
          %593 = vmatmul.bf16.gmra.mxu0 %v477
          %v594 = vpop.f32.mrf.mxu0
          %v595 = vadd.f32 0.0, %v594
          %v596 = vpop.f32.mrf.mxu0
          %v597 = vadd.f32 0.0, %v596
          %598 = vmatmul.bf16.gmra.mxu0 %v478
          %v599 = vpop.f32.mrf.mxu0
          %v600 = vadd.f32 0.0, %v599
          %v601 = vpop.f32.mrf.mxu0
          %v602 = vadd.f32 0.0, %v601
          %603 = vmatmul.bf16.gmra.mxu0 %v479
          %v604 = vpop.f32.mrf.mxu0
          %v605 = vadd.f32 0.0, %v604
          %v606 = vpop.f32.mrf.mxu0
          %v607 = vadd.f32 0.0, %v606
          %608 = vmatmul.bf16.gmra.mxu0 %v480
          %v609 = vpop.f32.mrf.mxu0
          %v610 = vadd.f32 0.0, %v609
          %v611 = vpop.f32.mrf.mxu0
          %v612 = vadd.f32 0.0, %v611
          %613 = vmatmul.bf16.gmra.mxu0 %v481
          %v614 = vpop.f32.mrf.mxu0
          %v615 = vadd.f32 0.0, %v614
          %v616 = vpop.f32.mrf.mxu0
          %v617 = vadd.f32 0.0, %v616
          %618 = vdwg.mxu0
          %619 = vmatpush.bf16.msra.mxu0 %v553
          %620 = vmatpush.bf16.msra.mxu0 %v551
          %621 = vmatpush.bf16.msra.mxu0 %v549
          %622 = vmatpush.bf16.msra.mxu0 %v547
          %623 = vmatpush.bf16.msra.mxu0 %v545
          %624 = vmatpush.bf16.msra.mxu0 %v543
          %625 = vmatpush.bf16.msra.mxu0 %v541
          %626 = vmatpush.bf16.msra.mxu0 %v539
          %627 = vmatmul.bf16.gmra.mxu0 %v474
          %v628 = vpop.f32.mrf.mxu0
          %v629 = vadd.f32 0.0, %v628
          %v630 = vpop.f32.mrf.mxu0
          %v631 = vadd.f32 0.0, %v630
          %632 = vmatmul.bf16.gmra.mxu0 %v475
          %v633 = vpop.f32.mrf.mxu0
          %v634 = vadd.f32 0.0, %v633
          %v635 = vpop.f32.mrf.mxu0
          %v636 = vadd.f32 0.0, %v635
          %637 = vmatmul.bf16.gmra.mxu0 %v476
          %v638 = vpop.f32.mrf.mxu0
          %v639 = vadd.f32 0.0, %v638
          %v640 = vpop.f32.mrf.mxu0
          %v641 = vadd.f32 0.0, %v640
          %642 = vmatmul.bf16.gmra.mxu0 %v477
          %v643 = vpop.f32.mrf.mxu0
          %v644 = vadd.f32 0.0, %v643
          %v645 = vpop.f32.mrf.mxu0
          %v646 = vadd.f32 0.0, %v645
          %647 = vmatmul.bf16.gmra.mxu0 %v478
          %v648 = vpop.f32.mrf.mxu0
          %v649 = vadd.f32 0.0, %v648
          %v650 = vpop.f32.mrf.mxu0
          %v651 = vadd.f32 0.0, %v650
          %652 = vmatmul.bf16.gmra.mxu0 %v479
          %v653 = vpop.f32.mrf.mxu0
          %v654 = vadd.f32 0.0, %v653
          %v655 = vpop.f32.mrf.mxu0
          %v656 = vadd.f32 0.0, %v655
          %657 = vmatmul.bf16.gmra.mxu0 %v480
          %v658 = vpop.f32.mrf.mxu0
          %v659 = vadd.f32 0.0, %v658
          %v660 = vpop.f32.mrf.mxu0
          %v661 = vadd.f32 0.0, %v660
          %662 = vmatmul.bf16.gmra.mxu0 %v481
          %v663 = vpop.f32.mrf.mxu0
          %v664 = vadd.f32 0.0, %v663
          %v665 = vpop.f32.mrf.mxu0
          %v666 = vadd.f32 0.0, %v665
          %667 = vdwg.mxu0
          %v668 = vpack.c.bf16 %v580, %v580
          %v669 = vpack.c.bf16 %v582, %v582
          %v670 = vpack.c.bf16 %v585, %v585
          %v671 = vpack.c.bf16 %v587, %v587
          %v672 = vpack.c.bf16 %v590, %v590
          %v673 = vpack.c.bf16 %v592, %v592
          %v674 = vpack.c.bf16 %v595, %v595
          %v675 = vpack.c.bf16 %v597, %v597
          %v676 = vpack.c.bf16 %v600, %v600
          %v677 = vpack.c.bf16 %v602, %v602
          %v678 = vpack.c.bf16 %v605, %v605
          %v679 = vpack.c.bf16 %v607, %v607
          %v680 = vpack.c.bf16 %v610, %v610
          %v681 = vpack.c.bf16 %v612, %v612
          %v682 = vpack.c.bf16 %v615, %v615
          %v683 = vpack.c.bf16 %v617, %v617
          %684 = vst [vmem:[#allocation2] sm:$0xf] %v668
          %685 = vst [vmem:[#allocation2 + $0x4] sm:$0xf] %v669
          %686 = vst [vmem:[#allocation2 + $0x8] sm:$0xf] %v670
          %687 = vst [vmem:[#allocation2 + $0xc] sm:$0xf] %v671
          %688 = vst [vmem:[#allocation2 + $0x10] sm:$0xf] %v672
          %689 = vst [vmem:[#allocation2 + $0x14] sm:$0xf] %v673
          %690 = vst [vmem:[#allocation2 + $0x18] sm:$0xf] %v674
          %691 = vst [vmem:[#allocation2 + $0x1c] sm:$0xf] %v675
          %692 = vst [vmem:[#allocation2 + $0x20] sm:$0xf] %v676
          %693 = vst [vmem:[#allocation2 + $0x24] sm:$0xf] %v677
          %694 = vst [vmem:[#allocation2 + $0x28] sm:$0xf] %v678
          %695 = vst [vmem:[#allocation2 + $0x2c] sm:$0xf] %v679
          %696 = vst [vmem:[#allocation2 + $0x30] sm:$0xf] %v680
          %697 = vst [vmem:[#allocation2 + $0x34] sm:$0xf] %v681
          %698 = vst [vmem:[#allocation2 + $0x38] sm:$0xf] %v682
          %699 = vst [vmem:[#allocation2 + $0x3c] sm:$0xf] %v683
          %v700 = vpack.c.bf16 %v629, %v629
          %v701 = vpack.c.bf16 %v631, %v631
          %v702 = vpack.c.bf16 %v634, %v634
          %v703 = vpack.c.bf16 %v636, %v636
          %v704 = vpack.c.bf16 %v639, %v639
          %v705 = vpack.c.bf16 %v641, %v641
          %v706 = vpack.c.bf16 %v644, %v644
          %v707 = vpack.c.bf16 %v646, %v646
          %v708 = vpack.c.bf16 %v649, %v649
          %v709 = vpack.c.bf16 %v651, %v651
          %v710 = vpack.c.bf16 %v654, %v654
          %v711 = vpack.c.bf16 %v656, %v656
          %v712 = vpack.c.bf16 %v659, %v659
          %v713 = vpack.c.bf16 %v661, %v661
          %v714 = vpack.c.bf16 %v664, %v664
          %v715 = vpack.c.bf16 %v666, %v666
          %716 = vst [vmem:[#allocation3] sm:$0xf] %v700
          %717 = vst [vmem:[#allocation3 + $0x4] sm:$0xf] %v701
          %718 = vst [vmem:[#allocation3 + $0x8] sm:$0xf] %v702
          %719 = vst [vmem:[#allocation3 + $0xc] sm:$0xf] %v703
          %720 = vst [vmem:[#allocation3 + $0x10] sm:$0xf] %v704
          %721 = vst [vmem:[#allocation3 + $0x14] sm:$0xf] %v705
          %722 = vst [vmem:[#allocation3 + $0x18] sm:$0xf] %v706
          %723 = vst [vmem:[#allocation3 + $0x1c] sm:$0xf] %v707
          %724 = vst [vmem:[#allocation3 + $0x20] sm:$0xf] %v708
          %725 = vst [vmem:[#allocation3 + $0x24] sm:$0xf] %v709
          %726 = vst [vmem:[#allocation3 + $0x28] sm:$0xf] %v710
          %727 = vst [vmem:[#allocation3 + $0x2c] sm:$0xf] %v711
          %728 = vst [vmem:[#allocation3 + $0x30] sm:$0xf] %v712
          %729 = vst [vmem:[#allocation3 + $0x34] sm:$0xf] %v713
          %730 = vst [vmem:[#allocation3 + $0x38] sm:$0xf] %v714
          %731 = vst [vmem:[#allocation3 + $0x3c] sm:$0xf] %v715
        $region64: #{tpu_custom_call.1} parent=39 // pred_fallthru
          _
        %v732 = vld [vmem:[#allocation12] sm:$0xf]
        %v733 = vld [vmem:[#allocation12 + $0x4] sm:$0xf]
        %v734 = vld [vmem:[#allocation12 + $0x8] sm:$0xf]
        %v735 = vld [vmem:[#allocation12 + $0xc] sm:$0xf]
        %v736 = vld [vmem:[#allocation12 + $0x10] sm:$0xf]
        %v737 = vld [vmem:[#allocation12 + $0x14] sm:$0xf]
        %v738 = vld [vmem:[#allocation12 + $0x18] sm:$0xf]
        %v739 = vld [vmem:[#allocation12 + $0x1c] sm:$0xf]
        %v740 = vld [vmem:[#allocation12 + $0x20] sm:$0xf]
        %v741 = vld [vmem:[#allocation12 + $0x24] sm:$0xf]
        %v742 = vld [vmem:[#allocation12 + $0x28] sm:$0xf]
        %v743 = vld [vmem:[#allocation12 + $0x2c] sm:$0xf]
        %v744 = vld [vmem:[#allocation12 + $0x30] sm:$0xf]
        %v745 = vld [vmem:[#allocation12 + $0x34] sm:$0xf]
        %v746 = vld [vmem:[#allocation12 + $0x38] sm:$0xf]
        %v747 = vld [vmem:[#allocation12 + $0x3c] sm:$0xf]
        %v748 = vld [vmem:[%s343] sm:$0xf]
        %v765 = vunpack.c.l.b16 %v732
        %v766 = vunpack.c.l.b16 %v733
        %v767 = vunpack.c.l.b16 %v734
        %v768 = vunpack.c.l.b16 %v735
        %v769 = vunpack.c.l.b16 %v736
        %v770 = vunpack.c.l.b16 %v737
        %v771 = vunpack.c.l.b16 %v738
        %v772 = vunpack.c.l.b16 %v739
        %v773 = vunpack.c.l.b16 %v740
        %v774 = vunpack.c.l.b16 %v741
        %v775 = vunpack.c.l.b16 %v742
        %v776 = vunpack.c.l.b16 %v743
        %v777 = vunpack.c.l.b16 %v744
        %v778 = vunpack.c.l.b16 %v745
        %v779 = vunpack.c.l.b16 %v746
        %v780 = vunpack.c.l.b16 %v747
        %v781 = vpack.c.b16 %v766, %v765
        %v782 = vpack.c.b16 %v768, %v767
        %v783 = vpack.c.b16 %v770, %v769
        %v784 = vpack.c.b16 %v772, %v771
        %v785 = vpack.c.b16 %v774, %v773
        %v786 = vpack.c.b16 %v776, %v775
        %v787 = vpack.c.b16 %v778, %v777
        %v788 = vpack.c.b16 %v780, %v779
        %797 = vmatpush.bf16.msra.mxu0 %v788
        %798 = vmatpush.bf16.msra.mxu0 %v787
        %799 = vmatpush.bf16.msra.mxu0 %v786
        %800 = vmatpush.bf16.msra.mxu0 %v785
        %801 = vmatpush.bf16.msra.mxu0 %v784
        %802 = vmatpush.bf16.msra.mxu0 %v783
        %803 = vmatpush.bf16.msra.mxu0 %v782
        %804 = vmatpush.bf16.msra.mxu0 %v781
        %805 = vmatmul.bf16.gmra.mxu0 %v748
        %v806 = vpop.f32.mrf.mxu0
        %v807 = vadd.f32 0.0, %v806
        %v808 = vpop.f32.mrf.mxu0
        %809 = vdwg.mxu0
        %v810 = vpack.c.bf16 %v807, %v807
        %v811 = vld [vmem:[#allocation2] sm:$0xf]
        %v812 = vld [vmem:[#allocation2 + $0x4] sm:$0xf]
        %v813 = vld [vmem:[#allocation2 + $0x8] sm:$0xf]
        %v814 = vld [vmem:[#allocation2 + $0xc] sm:$0xf]
        %v815 = vld [vmem:[#allocation2 + $0x10] sm:$0xf]
        %v816 = vld [vmem:[#allocation2 + $0x14] sm:$0xf]
        %v817 = vld [vmem:[#allocation2 + $0x18] sm:$0xf]
        %v818 = vld [vmem:[#allocation2 + $0x1c] sm:$0xf]
        %v819 = vld [vmem:[#allocation2 + $0x20] sm:$0xf]
        %v820 = vld [vmem:[#allocation2 + $0x24] sm:$0xf]
        %v821 = vld [vmem:[#allocation2 + $0x28] sm:$0xf]
        %v822 = vld [vmem:[#allocation2 + $0x2c] sm:$0xf]
        %v823 = vld [vmem:[#allocation2 + $0x30] sm:$0xf]
        %v824 = vld [vmem:[#allocation2 + $0x34] sm:$0xf]
        %v825 = vld [vmem:[#allocation2 + $0x38] sm:$0xf]
        %v826 = vld [vmem:[#allocation2 + $0x3c] sm:$0xf]
        %v827 = vld [vmem:[%s352] sm:$0x1]
        %v829 = vperm.slane %v827, 0
        %v847 = vunpack.c.l.b16 %v811
        %v848 = vunpack.c.l.b16 %v812
        %v849 = vunpack.c.l.b16 %v813
        %v850 = vunpack.c.l.b16 %v814
        %v851 = vunpack.c.l.b16 %v815
        %v852 = vunpack.c.l.b16 %v816
        %v853 = vunpack.c.l.b16 %v817
        %v854 = vunpack.c.l.b16 %v818
        %v855 = vunpack.c.l.b16 %v819
        %v856 = vunpack.c.l.b16 %v820
        %v857 = vunpack.c.l.b16 %v821
        %v858 = vunpack.c.l.b16 %v822
        %v859 = vunpack.c.l.b16 %v823
        %v860 = vunpack.c.l.b16 %v824
        %v861 = vunpack.c.l.b16 %v825
        %v862 = vunpack.c.l.b16 %v826
        %v863 = vpack.c.b16 %v848, %v847
        %v864 = vpack.c.b16 %v850, %v849
        %v865 = vpack.c.b16 %v852, %v851
        %v866 = vpack.c.b16 %v854, %v853
        %v867 = vpack.c.b16 %v856, %v855
        %v868 = vpack.c.b16 %v858, %v857
        %v869 = vpack.c.b16 %v860, %v859
        %v870 = vpack.c.b16 %v862, %v861
        %879 = vmatpush.bf16.xpose.msra.mxu0 %v870
        %880 = vmatpush.bf16.xpose.msra.mxu0 %v869
        %881 = vmatpush.bf16.xpose.msra.mxu0 %v868
        %882 = vmatpush.bf16.xpose.msra.mxu0 %v867
        %883 = vmatpush.bf16.xpose.msra.mxu0 %v866
        %884 = vmatpush.bf16.xpose.msra.mxu0 %v865
        %885 = vmatpush.bf16.xpose.msra.mxu0 %v864
        %886 = vmatpush.bf16.xpose.msra.mxu0 %v863
        %887 = vmatmul.bf16.gmra.mxu0 %v810
        %v888 = vpop.f32.mrf.mxu0
        %v889 = vadd.f32 %v829, %v888
        %v890 = vpop.f32.mrf.mxu0
        %891 = vdwg.mxu0
        %892 = vmax.xlane.f32.xlu0 %v889
        %v893 = vpop.xlane.xlu0 %892
        %v894 = vsub.f32 %v889, %v893
        %v895 = vmul.f32 %v894, 1.442695
        %v896 = vpow.pop %v895
        %897 = vadd.xlane.f32.xlu0 %v896
        %v898 = vpop.xlane.xlu0 %897
        %v899 = vrcp.pop %v898
        %v900 = vmul.f32 %v896, %v899
        %v901 = vpack.c.bf16 %v900, %v900
        %v902 = vld [vmem:[#allocation3] sm:$0xf]
        %v903 = vld [vmem:[#allocation3 + $0x4] sm:$0xf]
        %v904 = vld [vmem:[#allocation3 + $0x8] sm:$0xf]
        %v905 = vld [vmem:[#allocation3 + $0xc] sm:$0xf]
        %v906 = vld [vmem:[#allocation3 + $0x10] sm:$0xf]
        %v907 = vld [vmem:[#allocation3 + $0x14] sm:$0xf]
        %v908 = vld [vmem:[#allocation3 + $0x18] sm:$0xf]
        %v909 = vld [vmem:[#allocation3 + $0x1c] sm:$0xf]
        %v910 = vld [vmem:[#allocation3 + $0x20] sm:$0xf]
        %v911 = vld [vmem:[#allocation3 + $0x24] sm:$0xf]
        %v912 = vld [vmem:[#allocation3 + $0x28] sm:$0xf]
        %v913 = vld [vmem:[#allocation3 + $0x2c] sm:$0xf]
        %v914 = vld [vmem:[#allocation3 + $0x30] sm:$0xf]
        %v915 = vld [vmem:[#allocation3 + $0x34] sm:$0xf]
        %v916 = vld [vmem:[#allocation3 + $0x38] sm:$0xf]
        %v917 = vld [vmem:[#allocation3 + $0x3c] sm:$0xf]
        %v934 = vunpack.c.l.b16 %v902
        %v935 = vunpack.c.l.b16 %v903
        %v936 = vunpack.c.l.b16 %v904
        %v937 = vunpack.c.l.b16 %v905
        %v938 = vunpack.c.l.b16 %v906
        %v939 = vunpack.c.l.b16 %v907
        %v940 = vunpack.c.l.b16 %v908
        %v941 = vunpack.c.l.b16 %v909
        %v942 = vunpack.c.l.b16 %v910
        %v943 = vunpack.c.l.b16 %v911
        %v944 = vunpack.c.l.b16 %v912
        %v945 = vunpack.c.l.b16 %v913
        %v946 = vunpack.c.l.b16 %v914
        %v947 = vunpack.c.l.b16 %v915
        %v948 = vunpack.c.l.b16 %v916
        %v949 = vunpack.c.l.b16 %v917
        %v950 = vpack.c.b16 %v935, %v934
        %v951 = vpack.c.b16 %v937, %v936
        %v952 = vpack.c.b16 %v939, %v938
        %v953 = vpack.c.b16 %v941, %v940
        %v954 = vpack.c.b16 %v943, %v942
        %v955 = vpack.c.b16 %v945, %v944
        %v956 = vpack.c.b16 %v947, %v946
        %v957 = vpack.c.b16 %v949, %v948
        %966 = vmatpush.bf16.msra.mxu0 %v957
        %967 = vmatpush.bf16.msra.mxu0 %v956
        %968 = vmatpush.bf16.msra.mxu0 %v955
        %969 = vmatpush.bf16.msra.mxu0 %v954
        %970 = vmatpush.bf16.msra.mxu0 %v953
        %971 = vmatpush.bf16.msra.mxu0 %v952
        %972 = vmatpush.bf16.msra.mxu0 %v951
        %973 = vmatpush.bf16.msra.mxu0 %v950
        %974 = vmatmul.bf16.gmra.mxu0 %v901
        %v975 = vpop.f32.mrf.mxu0
        %v976 = vadd.f32 0.0, %v975
        %v977 = vpop.f32.mrf.mxu0
        %978 = vdwg.mxu0
        %979 = vst [vmem:[%s398] sm:$0xff] %v976
        %980 = vst [vmem:[%s405] sm:$0xff] %v900
        %s981 = sand.u32 %s175, 1
        %s982 = scalar_lea.sflag [#allocation6], %s981
        %s983 = sand.u32 %s175, 1
        %s984 = smul.addr %s983, 8
        %s985 = scalar_lea.vmem [#allocation13], %s984
        %s986 = sand.u32 %s203, 1
        %s987 = scalar_lea.sflag [#allocation15], %s986
        %s988 = sand.u32 %s203, 1
        %s989 = smul.addr %s988, 8
        %s990 = scalar_lea.vmem [#allocation14], %s989
        // Predicated region
        $region65: #{tpu_custom_call.1} parent=39 // pred_check
          %p991 = pneg %p185
        $region66: #{tpu_custom_call.1} parent=39 // pred_check_branch
          %993 = sbr.rel (%p991) target = $region68
        $region67: #{tpu_custom_call.1} parent=39 // pred_region
          %995 = vsyncadd %s982, 0
          %s996 = sadd.s32 %s36, %s35
          %s997 = smul.addr %s996, 8
          %s998 = scalar_lea.hbm %s5, %s997
          %s1000 = sshll.u32 %s985, 4
          %s1001 = int_to_ptr.vmem [resolvable:$true] %s1000
          %s1002 = sshll.u32 %s998, 4
          %s1003 = int_to_ptr.hbm [resolvable:$true] %s1002
          %1005 = dma.vmem_to_hbm [thread:$0]  %s1001, 128, %s1003, %s982
        $region68: #{tpu_custom_call.1} parent=39 // pred_fallthru
          _
        // Predicated region
        $region69: #{tpu_custom_call.1} parent=39 // pred_check
          %p1006 = pneg %p213
        $region70: #{tpu_custom_call.1} parent=39 // pred_check_branch
          %1008 = sbr.rel (%p1006) target = $region72
        $region71: #{tpu_custom_call.1} parent=39 // pred_region
          %1010 = vsyncadd %s987, 0
          %s1011 = sadd.s32 %s36, %s35
          %s1012 = smul.addr %s1011, 8
          %s1013 = scalar_lea.hbm %s6, %s1012
          %s1015 = sshll.u32 %s990, 4
          %s1016 = int_to_ptr.vmem [resolvable:$true] %s1015
          %s1017 = sshll.u32 %s1013, 4
          %s1018 = int_to_ptr.hbm [resolvable:$true] %s1017
          %1020 = dma.vmem_to_hbm [thread:$0]  %s1016, 128, %s1018, %s987
        $region72: #{tpu_custom_call.1} parent=39 // pred_fallthru
          _
      $region40: #{tpu_custom_call.1} parent=5 // pred_fallthru
        _
      %p1021 = scmp.le.s32.totalorder 2, %s26
      // Predicated region
      $region73: #{tpu_custom_call.1} parent=5 // pred_check
        %p1022 = pneg %p1021
      $region74: #{tpu_custom_call.1} parent=5 // pred_check_branch
        %1024 = sbr.rel (%p1022) target = $region76
      $region75: #{tpu_custom_call.1} parent=5 // pred_region
        %s1025 = ssub.s32 %s26, 2
        // Predicated region
        $region77: #{tpu_custom_call.1} parent=75 // pred_check
          %p1026 = pneg %p191
        $region78: #{tpu_custom_call.1} parent=75 // pred_check_branch
          %1028 = sbr.rel (%p1026) target = $region80
        $region79: #{tpu_custom_call.1} parent=75 // pred_region
          %s1029 = sand.u32 %s176, 1
          %s1030 = scalar_lea.sflag [#allocation6], %s1029
          %s1031 = sand.u32 %s176, 1
          %s1032 = smul.addr %s1031, 8
          %s1033 = scalar_lea.vmem [#allocation13], %s1032
          %1035 = dma.done %s1030, 128
        $region80: #{tpu_custom_call.1} parent=75 // pred_fallthru
          _
        // Predicated region
        $region81: #{tpu_custom_call.1} parent=75 // pred_check
          %p1036 = pneg %p219
        $region82: #{tpu_custom_call.1} parent=75 // pred_check_branch
          %1038 = sbr.rel (%p1036) target = $region84
        $region83: #{tpu_custom_call.1} parent=75 // pred_region
          %s1039 = sand.u32 %s204, 1
          %s1040 = scalar_lea.sflag [#allocation15], %s1039
          %s1041 = sand.u32 %s204, 1
          %s1042 = smul.addr %s1041, 8
          %s1043 = scalar_lea.vmem [#allocation14], %s1042
          %1045 = dma.done %s1040, 128
        $region84: #{tpu_custom_call.1} parent=75 // pred_fallthru
          _
      $region76: #{tpu_custom_call.1} parent=5 // pred_fallthru
        _
    $region6: #{tpu_custom_call.1} parent=1 // loop_footer
      %s30 = sadd.s32 1, %s26
    $region7: #{tpu_custom_call.1} parent=1 // loop_footer_branch
      %25 = sbr.rel target = $region3
    $region8: #{tpu_custom_call.1} parent=1 // loop_exit
      _
    %1046 = vsyncpa [#allocation5], 1
    %s1047 = scalar_lea.sflag [#allocation5], 1
    %1048 = vsyncpa %s1047, 1
    %1049 = vsyncpa [#allocation8], 1
    %s1050 = scalar_lea.sflag [#allocation8], 1
    %1051 = vsyncpa %s1050, 1
    %1052 = vsyncpa [#allocation11], 1
    %1053 = vsyncpa [#allocation6], 1
    %s1054 = scalar_lea.sflag [#allocation6], 1
    %1055 = vsyncpa %s1054, 1
    %1056 = vsyncpa [#allocation15], 1
    %s1057 = scalar_lea.sflag [#allocation15], 1
    %1058 = vsyncpa %s1057, 1

</llo_original>
